<compile_context>
chip_gen: v5e
topology: v5e:2x2
jax: 0.10.0
libtpu: 0.0.40
codegen_flags: <defaults>
</compile_context>

<pallas_src>
import jax
import jax.numpy as jnp
from jax.experimental import pallas as pl
from jax.experimental.pallas import tpu as pltpu


def _attention_kernel(x_ref, w1_ref, b1_ref, w2_ref, o_ref):
    # x_ref : (TB, S*F)  one batch per sublane row, features of all S positions in lanes
    # w1_ref: (F, H)     Linear(50,25) weight (torch weight.T)
    # b1_ref: (1, H)     Linear(50,25) bias
    # w2_ref: (1, H)     Linear(25,1) weight as a row vector (bias folded out)
    # o_ref : (TB, S)    softmax over the sequence axis (lane-dense)
    TB, S = o_ref.shape
    F = w1_ref.shape[0]

    lane = jax.lax.broadcasted_iota(jnp.int32, (TB, S), 1)
    scores = jnp.zeros((TB, S), dtype=jnp.float32)

    # One MXU matmul per sequence position; everything stays sublane/lane friendly so the
    # per-batch scores land lane-dense in `scores` without any relayout.
    for s in range(S):  # static unroll, S is small
        x_s = x_ref[:, s * F:(s + 1) * F]                              # (TB, F)
        h = jnp.dot(x_s, w1_ref[...], preferred_element_type=jnp.float32)
        h = jnp.maximum(h + b1_ref[...], 0.0)                          # (TB, H), ReLU
        # TODO(synk): Dropout(p=config.dropout_prob) is identity in eval mode; omitted.
        col = jnp.sum(h * w2_ref[...], axis=-1, keepdims=True)         # (TB, 1) Linear(25,1)
        scores = jnp.where(lane == s, col, scores)                     # place into lane s

    # Numerically-stable softmax over the sequence axis (now the lane axis).
    m = jnp.max(scores, axis=-1, keepdims=True)
    e = jnp.exp(scores - m)
    denom = jnp.sum(e, axis=-1, keepdims=True)
    # Exact reciprocal (approx=True EUP rcp would not hold the 1e-5 reference tolerance).
    o_ref[...] = (e * pl.reciprocal(denom, approx=False)).astype(o_ref.dtype)


def _choose_block_batches(B, requested):
    """Largest legal block size <= requested that needs no batch padding (None -> must pad)."""
    requested = max(1, min(requested, B))
    if B <= requested:
        half = B // 2
        if half >= 8 and B % 16 == 0:
            return half            # >= 2 blocks -> megacore-shardable on v7x
        return B                   # single block equal to the full batch (always legal)
    start = requested - (requested % 8)
    for tb in range(start, 7, -8):  # largest multiple of 8 that divides B
        if B % tb == 0:
            return tb
    return None


def attention_mechanism(x, w1, b1, w2, b2=None, *, block_batches=1024):
    """softmax(Linear(25,1)(ReLU(Linear(50,25)(x))), axis=1) -> (B, S, 1).

    x: (B, S, 50); w1: (50, 25) (torch weight.T); b1: (1, 25); w2: (25, 1) (torch weight.T).
    b2 is accepted for interface parity but unused (softmax is shift-invariant).
    """
    del b2
    B, S, F = x.shape
    H = w1.shape[1]

    TB = _choose_block_batches(B, block_batches)
    if TB is None:
        # Rare fallback (B has no tile-friendly divisor <= block_batches): pad the batch.
        TB = max(8, (min(block_batches, B) // 8) * 8)
        Bp = pl.cdiv(B, TB) * TB
        x = jnp.pad(x, ((0, Bp - B), (0, 0), (0, 0)))
    else:
        Bp = B
    n_blocks = Bp // TB

    x2 = x.reshape(Bp, S * F)          # contiguous reshape; no HBM copy
    b1_row = b1.reshape(1, H)
    w2_row = w2.reshape(1, H)          # (25, 1) -> (1, 25)

    flops = 2 * Bp * S * F * H + 2 * Bp * S * H
    bytes_accessed = Bp * S * F * 4 + Bp * S * 4 + (F * H + 2 * H) * 4

    out = pl.pallas_call(
        _attention_kernel,
        out_shape=jax.ShapeDtypeStruct((Bp, S), x.dtype),
        grid_spec=pltpu.PrefetchScalarGridSpec(
            num_scalar_prefetch=0,
            grid=(n_blocks,),
            in_specs=[
                pl.BlockSpec((TB, S * F), lambda i: (i, 0)),   # TB wide rows per step
                pl.BlockSpec((F, H),      lambda i: (0, 0)),   # w1 (resident)
                pl.BlockSpec((1, H),      lambda i: (0, 0)),   # b1
                pl.BlockSpec((1, H),      lambda i: (0, 0)),   # w2 row
            ],
            out_specs=pl.BlockSpec((TB, S), lambda i: (i, 0)),  # lane-dense 2-D score slab
        ),
        compiler_params=pltpu.CompilerParams(
            dimension_semantics=("parallel",),                  # megacore-shardable on v7x
            vmem_limit_bytes=32 * 1024 * 1024,                  # headroom over v5e's 16 MiB default
        ),
        cost_estimate=pl.CostEstimate(
            flops=flops, transcendentals=Bp * S, bytes_accessed=bytes_accessed),
    )(x2, w1, b1_row, w2_row)

    return out[:B].reshape(B, S, 1)


def reference(x, w1, b1, w2, b2):
    h = jnp.maximum(jnp.einsum("bsf,fh->bsh", x, w1) + b1.reshape(1, 1, -1), 0.0)
    w = jnp.einsum("bsh,ho->bso", h, w2) + b2.reshape(1, 1, -1)
    return jax.nn.softmax(w, axis=1)


if __name__ == "__main__":
    F_IN, H = 50, 25
    key = jax.random.PRNGKey(0)
    kx, kw1, kb1, kw2, kb2 = jax.random.split(key, 5)

    # Synthetic parameters (shapes from nn.Linear(50,25) / nn.Linear(25,1), torch-weight.T).
    w1 = jax.random.normal(kw1, (F_IN, H), dtype=jnp.float32) * 0.1
    b1 = jax.random.normal(kb1, (1, H), dtype=jnp.float32) * 0.1
    w2 = jax.random.normal(kw2, (H, 1), dtype=jnp.float32) * 0.1
    b2 = jax.random.normal(kb2, (1, 1), dtype=jnp.float32) * 0.1

    # Primary check: B=64 -> TB=32, grid=(2,), no padding anywhere.
    B, S = 64, 8
    x = jax.random.normal(kx, (B, S, F_IN), dtype=jnp.float32)
    out = jax.block_until_ready(attention_mechanism(x, w1, b1, w2, b2))
    ref = reference(x, w1, b1, w2, b2)
    assert out.shape == (B, S, 1)
    assert jnp.allclose(out, ref, atol=1e-5, rtol=1e-5), "mismatch vs pure-JAX reference (B=64)"

    # Ragged batch: B=5 -> single block equal to the full batch, still no padding.
    B2 = 5
    x2 = jax.random.normal(jax.random.PRNGKey(1), (B2, S, F_IN), dtype=jnp.float32)
    out2 = jax.block_until_ready(attention_mechanism(x2, w1, b1, w2, b2))
    ref2 = reference(x2, w1, b1, w2, b2)
    assert out2.shape == (B2, S, 1)
    assert jnp.allclose(out2, ref2, atol=1e-5, rtol=1e-5), "mismatch vs pure-JAX reference (B=5)"

    print("KERNEL_OK")
</pallas_src>

<mosaic_0001>
module attributes {stable_mosaic.version = 11 : i64} {
  func.func @_attention_kernel(%arg0: i32, %arg1: memref<32x400xf32, #tpu.memory_space<vmem>>, %arg2: memref<50x25xf32, #tpu.memory_space<vmem>>, %arg3: memref<1x25xf32, #tpu.memory_space<vmem>>, %arg4: memref<1x25xf32, #tpu.memory_space<vmem>>, %arg5: memref<32x8xf32, #tpu.memory_space<vmem>>) attributes {dimension_semantics = [#tpu.dimension_semantics<parallel>], iteration_bounds = array<i64: 2>, scalar_prefetch = 0 : i64, scratch_operands = 0 : i64, tpu.core_type = #tpu.core_type<tc>, window_params = [{transform_indices = @transform_0, window_bounds = array<i64: 32, 400>}, {pipeline_mode = #tpu.pipeline_mode<synchronous>, transform_indices = @transform_1, window_bounds = array<i64: 50, 25>}, {pipeline_mode = #tpu.pipeline_mode<synchronous>, transform_indices = @transform_2, window_bounds = array<i64: 1, 25>}, {pipeline_mode = #tpu.pipeline_mode<synchronous>, transform_indices = @transform_3, window_bounds = array<i64: 1, 25>}, {transform_indices = @transform_4, window_bounds = array<i64: 32, 8>}]} {
    %0 = tpu.iota {dimensions = array<i32: 1>} : vector<32x8xi32>
    %cst = arith.constant 0.000000e+00 : f32
    %1 = vector.broadcast %cst : f32 to vector<32x8xf32>
    %c0 = arith.constant 0 : index
    %c0_0 = arith.constant 0 : index
    %2 = vector.load %arg1[%c0, %c0_0] : memref<32x400xf32, #tpu.memory_space<vmem>>, vector<32x50xf32>
    %c0_1 = arith.constant 0 : index
    %c0_2 = arith.constant 0 : index
    %3 = vector.load %arg2[%c0_1, %c0_2] : memref<50x25xf32, #tpu.memory_space<vmem>>, vector<50x25xf32>
    %cst_3 = arith.constant dense<0.000000e+00> : vector<32x25xf32>
    %4 = tpu.matmul %2, %3, %cst_3 {dimension_numbers = #tpu.dot_dimension_numbers<[1], [0], [0], [1], [0, 0, 1, 1], [], []>} : vector<32x50xf32>, vector<50x25xf32>, vector<32x25xf32> -> vector<32x25xf32>
    %c0_4 = arith.constant 0 : index
    %c0_5 = arith.constant 0 : index
    %5 = vector.load %arg3[%c0_4, %c0_5] : memref<1x25xf32, #tpu.memory_space<vmem>>, vector<1x25xf32>
    %6 = vector.broadcast %5 : vector<1x25xf32> to vector<32x25xf32>
    %7 = arith.addf %4, %6 : vector<32x25xf32>
    %cst_6 = arith.constant 0.000000e+00 : f32
    %8 = vector.broadcast %cst_6 : f32 to vector<32x25xf32>
    %9 = arith.maximumf %7, %8 : vector<32x25xf32>
    %c0_7 = arith.constant 0 : index
    %c0_8 = arith.constant 0 : index
    %10 = vector.load %arg4[%c0_7, %c0_8] : memref<1x25xf32, #tpu.memory_space<vmem>>, vector<1x25xf32>
    %11 = vector.broadcast %10 : vector<1x25xf32> to vector<32x25xf32>
    %12 = arith.mulf %9, %11 : vector<32x25xf32>
    %cst_9 = arith.constant dense<0.000000e+00> : vector<32xf32>
    %13 = vector.multi_reduction <add>, %12, %cst_9 [1] : vector<32x25xf32> to vector<32xf32>
    %14 = vector.shape_cast %13 : vector<32xf32> to vector<32x1xf32>
    %c0_i32 = arith.constant 0 : i32
    %15 = vector.broadcast %c0_i32 : i32 to vector<32x8xi32>
    %16 = arith.cmpi eq, %0, %15 : vector<32x8xi32>
    %17 = vector.shape_cast %14 : vector<32x1xf32> to vector<32x1xf32>
    %18 = vector.broadcast %17 : vector<32x1xf32> to vector<32x8xf32>
    %19 = arith.select %16, %18, %1 : vector<32x8xi1>, vector<32x8xf32>
    %c0_10 = arith.constant 0 : index
    %c50 = arith.constant 50 : index
    %20 = vector.load %arg1[%c0_10, %c50] : memref<32x400xf32, #tpu.memory_space<vmem>>, vector<32x50xf32>
    %c0_11 = arith.constant 0 : index
    %c0_12 = arith.constant 0 : index
    %21 = vector.load %arg2[%c0_11, %c0_12] : memref<50x25xf32, #tpu.memory_space<vmem>>, vector<50x25xf32>
    %cst_13 = arith.constant dense<0.000000e+00> : vector<32x25xf32>
    %22 = tpu.matmul %20, %21, %cst_13 {dimension_numbers = #tpu.dot_dimension_numbers<[1], [0], [0], [1], [0, 0, 1, 1], [], []>} : vector<32x50xf32>, vector<50x25xf32>, vector<32x25xf32> -> vector<32x25xf32>
    %c0_14 = arith.constant 0 : index
    %c0_15 = arith.constant 0 : index
    %23 = vector.load %arg3[%c0_14, %c0_15] : memref<1x25xf32, #tpu.memory_space<vmem>>, vector<1x25xf32>
    %24 = vector.broadcast %23 : vector<1x25xf32> to vector<32x25xf32>
    %25 = arith.addf %22, %24 : vector<32x25xf32>
    %cst_16 = arith.constant 0.000000e+00 : f32
    %26 = vector.broadcast %cst_16 : f32 to vector<32x25xf32>
    %27 = arith.maximumf %25, %26 : vector<32x25xf32>
    %c0_17 = arith.constant 0 : index
    %c0_18 = arith.constant 0 : index
    %28 = vector.load %arg4[%c0_17, %c0_18] : memref<1x25xf32, #tpu.memory_space<vmem>>, vector<1x25xf32>
    %29 = vector.broadcast %28 : vector<1x25xf32> to vector<32x25xf32>
    %30 = arith.mulf %27, %29 : vector<32x25xf32>
    %cst_19 = arith.constant dense<0.000000e+00> : vector<32xf32>
    %31 = vector.multi_reduction <add>, %30, %cst_19 [1] : vector<32x25xf32> to vector<32xf32>
    %32 = vector.shape_cast %31 : vector<32xf32> to vector<32x1xf32>
    %c1_i32 = arith.constant 1 : i32
    %33 = vector.broadcast %c1_i32 : i32 to vector<32x8xi32>
    %34 = arith.cmpi eq, %0, %33 : vector<32x8xi32>
    %35 = vector.shape_cast %32 : vector<32x1xf32> to vector<32x1xf32>
    %36 = vector.broadcast %35 : vector<32x1xf32> to vector<32x8xf32>
    %37 = arith.select %34, %36, %19 : vector<32x8xi1>, vector<32x8xf32>
    %c0_20 = arith.constant 0 : index
    %c100 = arith.constant 100 : index
    %38 = vector.load %arg1[%c0_20, %c100] : memref<32x400xf32, #tpu.memory_space<vmem>>, vector<32x50xf32>
    %c0_21 = arith.constant 0 : index
    %c0_22 = arith.constant 0 : index
    %39 = vector.load %arg2[%c0_21, %c0_22] : memref<50x25xf32, #tpu.memory_space<vmem>>, vector<50x25xf32>
    %cst_23 = arith.constant dense<0.000000e+00> : vector<32x25xf32>
    %40 = tpu.matmul %38, %39, %cst_23 {dimension_numbers = #tpu.dot_dimension_numbers<[1], [0], [0], [1], [0, 0, 1, 1], [], []>} : vector<32x50xf32>, vector<50x25xf32>, vector<32x25xf32> -> vector<32x25xf32>
    %c0_24 = arith.constant 0 : index
    %c0_25 = arith.constant 0 : index
    %41 = vector.load %arg3[%c0_24, %c0_25] : memref<1x25xf32, #tpu.memory_space<vmem>>, vector<1x25xf32>
    %42 = vector.broadcast %41 : vector<1x25xf32> to vector<32x25xf32>
    %43 = arith.addf %40, %42 : vector<32x25xf32>
    %cst_26 = arith.constant 0.000000e+00 : f32
    %44 = vector.broadcast %cst_26 : f32 to vector<32x25xf32>
    %45 = arith.maximumf %43, %44 : vector<32x25xf32>
    %c0_27 = arith.constant 0 : index
    %c0_28 = arith.constant 0 : index
    %46 = vector.load %arg4[%c0_27, %c0_28] : memref<1x25xf32, #tpu.memory_space<vmem>>, vector<1x25xf32>
    %47 = vector.broadcast %46 : vector<1x25xf32> to vector<32x25xf32>
    %48 = arith.mulf %45, %47 : vector<32x25xf32>
    %cst_29 = arith.constant dense<0.000000e+00> : vector<32xf32>
    %49 = vector.multi_reduction <add>, %48, %cst_29 [1] : vector<32x25xf32> to vector<32xf32>
    %50 = vector.shape_cast %49 : vector<32xf32> to vector<32x1xf32>
    %c2_i32 = arith.constant 2 : i32
    %51 = vector.broadcast %c2_i32 : i32 to vector<32x8xi32>
    %52 = arith.cmpi eq, %0, %51 : vector<32x8xi32>
    %53 = vector.shape_cast %50 : vector<32x1xf32> to vector<32x1xf32>
    %54 = vector.broadcast %53 : vector<32x1xf32> to vector<32x8xf32>
    %55 = arith.select %52, %54, %37 : vector<32x8xi1>, vector<32x8xf32>
    %c0_30 = arith.constant 0 : index
    %c150 = arith.constant 150 : index
    %56 = vector.load %arg1[%c0_30, %c150] : memref<32x400xf32, #tpu.memory_space<vmem>>, vector<32x50xf32>
    %c0_31 = arith.constant 0 : index
    %c0_32 = arith.constant 0 : index
    %57 = vector.load %arg2[%c0_31, %c0_32] : memref<50x25xf32, #tpu.memory_space<vmem>>, vector<50x25xf32>
    %cst_33 = arith.constant dense<0.000000e+00> : vector<32x25xf32>
    %58 = tpu.matmul %56, %57, %cst_33 {dimension_numbers = #tpu.dot_dimension_numbers<[1], [0], [0], [1], [0, 0, 1, 1], [], []>} : vector<32x50xf32>, vector<50x25xf32>, vector<32x25xf32> -> vector<32x25xf32>
    %c0_34 = arith.constant 0 : index
    %c0_35 = arith.constant 0 : index
    %59 = vector.load %arg3[%c0_34, %c0_35] : memref<1x25xf32, #tpu.memory_space<vmem>>, vector<1x25xf32>
    %60 = vector.broadcast %59 : vector<1x25xf32> to vector<32x25xf32>
    %61 = arith.addf %58, %60 : vector<32x25xf32>
    %cst_36 = arith.constant 0.000000e+00 : f32
    %62 = vector.broadcast %cst_36 : f32 to vector<32x25xf32>
    %63 = arith.maximumf %61, %62 : vector<32x25xf32>
    %c0_37 = arith.constant 0 : index
    %c0_38 = arith.constant 0 : index
    %64 = vector.load %arg4[%c0_37, %c0_38] : memref<1x25xf32, #tpu.memory_space<vmem>>, vector<1x25xf32>
    %65 = vector.broadcast %64 : vector<1x25xf32> to vector<32x25xf32>
    %66 = arith.mulf %63, %65 : vector<32x25xf32>
    %cst_39 = arith.constant dense<0.000000e+00> : vector<32xf32>
    %67 = vector.multi_reduction <add>, %66, %cst_39 [1] : vector<32x25xf32> to vector<32xf32>
    %68 = vector.shape_cast %67 : vector<32xf32> to vector<32x1xf32>
    %c3_i32 = arith.constant 3 : i32
    %69 = vector.broadcast %c3_i32 : i32 to vector<32x8xi32>
    %70 = arith.cmpi eq, %0, %69 : vector<32x8xi32>
    %71 = vector.shape_cast %68 : vector<32x1xf32> to vector<32x1xf32>
    %72 = vector.broadcast %71 : vector<32x1xf32> to vector<32x8xf32>
    %73 = arith.select %70, %72, %55 : vector<32x8xi1>, vector<32x8xf32>
    %c0_40 = arith.constant 0 : index
    %c200 = arith.constant 200 : index
    %74 = vector.load %arg1[%c0_40, %c200] : memref<32x400xf32, #tpu.memory_space<vmem>>, vector<32x50xf32>
    %c0_41 = arith.constant 0 : index
    %c0_42 = arith.constant 0 : index
    %75 = vector.load %arg2[%c0_41, %c0_42] : memref<50x25xf32, #tpu.memory_space<vmem>>, vector<50x25xf32>
    %cst_43 = arith.constant dense<0.000000e+00> : vector<32x25xf32>
    %76 = tpu.matmul %74, %75, %cst_43 {dimension_numbers = #tpu.dot_dimension_numbers<[1], [0], [0], [1], [0, 0, 1, 1], [], []>} : vector<32x50xf32>, vector<50x25xf32>, vector<32x25xf32> -> vector<32x25xf32>
    %c0_44 = arith.constant 0 : index
    %c0_45 = arith.constant 0 : index
    %77 = vector.load %arg3[%c0_44, %c0_45] : memref<1x25xf32, #tpu.memory_space<vmem>>, vector<1x25xf32>
    %78 = vector.broadcast %77 : vector<1x25xf32> to vector<32x25xf32>
    %79 = arith.addf %76, %78 : vector<32x25xf32>
    %cst_46 = arith.constant 0.000000e+00 : f32
    %80 = vector.broadcast %cst_46 : f32 to vector<32x25xf32>
    %81 = arith.maximumf %79, %80 : vector<32x25xf32>
    %c0_47 = arith.constant 0 : index
    %c0_48 = arith.constant 0 : index
    %82 = vector.load %arg4[%c0_47, %c0_48] : memref<1x25xf32, #tpu.memory_space<vmem>>, vector<1x25xf32>
    %83 = vector.broadcast %82 : vector<1x25xf32> to vector<32x25xf32>
    %84 = arith.mulf %81, %83 : vector<32x25xf32>
    %cst_49 = arith.constant dense<0.000000e+00> : vector<32xf32>
    %85 = vector.multi_reduction <add>, %84, %cst_49 [1] : vector<32x25xf32> to vector<32xf32>
    %86 = vector.shape_cast %85 : vector<32xf32> to vector<32x1xf32>
    %c4_i32 = arith.constant 4 : i32
    %87 = vector.broadcast %c4_i32 : i32 to vector<32x8xi32>
    %88 = arith.cmpi eq, %0, %87 : vector<32x8xi32>
    %89 = vector.shape_cast %86 : vector<32x1xf32> to vector<32x1xf32>
    %90 = vector.broadcast %89 : vector<32x1xf32> to vector<32x8xf32>
    %91 = arith.select %88, %90, %73 : vector<32x8xi1>, vector<32x8xf32>
    %c0_50 = arith.constant 0 : index
    %c250 = arith.constant 250 : index
    %92 = vector.load %arg1[%c0_50, %c250] : memref<32x400xf32, #tpu.memory_space<vmem>>, vector<32x50xf32>
    %c0_51 = arith.constant 0 : index
    %c0_52 = arith.constant 0 : index
    %93 = vector.load %arg2[%c0_51, %c0_52] : memref<50x25xf32, #tpu.memory_space<vmem>>, vector<50x25xf32>
    %cst_53 = arith.constant dense<0.000000e+00> : vector<32x25xf32>
    %94 = tpu.matmul %92, %93, %cst_53 {dimension_numbers = #tpu.dot_dimension_numbers<[1], [0], [0], [1], [0, 0, 1, 1], [], []>} : vector<32x50xf32>, vector<50x25xf32>, vector<32x25xf32> -> vector<32x25xf32>
    %c0_54 = arith.constant 0 : index
    %c0_55 = arith.constant 0 : index
    %95 = vector.load %arg3[%c0_54, %c0_55] : memref<1x25xf32, #tpu.memory_space<vmem>>, vector<1x25xf32>
    %96 = vector.broadcast %95 : vector<1x25xf32> to vector<32x25xf32>
    %97 = arith.addf %94, %96 : vector<32x25xf32>
    %cst_56 = arith.constant 0.000000e+00 : f32
    %98 = vector.broadcast %cst_56 : f32 to vector<32x25xf32>
    %99 = arith.maximumf %97, %98 : vector<32x25xf32>
    %c0_57 = arith.constant 0 : index
    %c0_58 = arith.constant 0 : index
    %100 = vector.load %arg4[%c0_57, %c0_58] : memref<1x25xf32, #tpu.memory_space<vmem>>, vector<1x25xf32>
    %101 = vector.broadcast %100 : vector<1x25xf32> to vector<32x25xf32>
    %102 = arith.mulf %99, %101 : vector<32x25xf32>
    %cst_59 = arith.constant dense<0.000000e+00> : vector<32xf32>
    %103 = vector.multi_reduction <add>, %102, %cst_59 [1] : vector<32x25xf32> to vector<32xf32>
    %104 = vector.shape_cast %103 : vector<32xf32> to vector<32x1xf32>
    %c5_i32 = arith.constant 5 : i32
    %105 = vector.broadcast %c5_i32 : i32 to vector<32x8xi32>
    %106 = arith.cmpi eq, %0, %105 : vector<32x8xi32>
    %107 = vector.shape_cast %104 : vector<32x1xf32> to vector<32x1xf32>
    %108 = vector.broadcast %107 : vector<32x1xf32> to vector<32x8xf32>
    %109 = arith.select %106, %108, %91 : vector<32x8xi1>, vector<32x8xf32>
    %c0_60 = arith.constant 0 : index
    %c300 = arith.constant 300 : index
    %110 = vector.load %arg1[%c0_60, %c300] : memref<32x400xf32, #tpu.memory_space<vmem>>, vector<32x50xf32>
    %c0_61 = arith.constant 0 : index
    %c0_62 = arith.constant 0 : index
    %111 = vector.load %arg2[%c0_61, %c0_62] : memref<50x25xf32, #tpu.memory_space<vmem>>, vector<50x25xf32>
    %cst_63 = arith.constant dense<0.000000e+00> : vector<32x25xf32>
    %112 = tpu.matmul %110, %111, %cst_63 {dimension_numbers = #tpu.dot_dimension_numbers<[1], [0], [0], [1], [0, 0, 1, 1], [], []>} : vector<32x50xf32>, vector<50x25xf32>, vector<32x25xf32> -> vector<32x25xf32>
    %c0_64 = arith.constant 0 : index
    %c0_65 = arith.constant 0 : index
    %113 = vector.load %arg3[%c0_64, %c0_65] : memref<1x25xf32, #tpu.memory_space<vmem>>, vector<1x25xf32>
    %114 = vector.broadcast %113 : vector<1x25xf32> to vector<32x25xf32>
    %115 = arith.addf %112, %114 : vector<32x25xf32>
    %cst_66 = arith.constant 0.000000e+00 : f32
    %116 = vector.broadcast %cst_66 : f32 to vector<32x25xf32>
    %117 = arith.maximumf %115, %116 : vector<32x25xf32>
    %c0_67 = arith.constant 0 : index
    %c0_68 = arith.constant 0 : index
    %118 = vector.load %arg4[%c0_67, %c0_68] : memref<1x25xf32, #tpu.memory_space<vmem>>, vector<1x25xf32>
    %119 = vector.broadcast %118 : vector<1x25xf32> to vector<32x25xf32>
    %120 = arith.mulf %117, %119 : vector<32x25xf32>
    %cst_69 = arith.constant dense<0.000000e+00> : vector<32xf32>
    %121 = vector.multi_reduction <add>, %120, %cst_69 [1] : vector<32x25xf32> to vector<32xf32>
    %122 = vector.shape_cast %121 : vector<32xf32> to vector<32x1xf32>
    %c6_i32 = arith.constant 6 : i32
    %123 = vector.broadcast %c6_i32 : i32 to vector<32x8xi32>
    %124 = arith.cmpi eq, %0, %123 : vector<32x8xi32>
    %125 = vector.shape_cast %122 : vector<32x1xf32> to vector<32x1xf32>
    %126 = vector.broadcast %125 : vector<32x1xf32> to vector<32x8xf32>
    %127 = arith.select %124, %126, %109 : vector<32x8xi1>, vector<32x8xf32>
    %c0_70 = arith.constant 0 : index
    %c350 = arith.constant 350 : index
    %128 = vector.load %arg1[%c0_70, %c350] : memref<32x400xf32, #tpu.memory_space<vmem>>, vector<32x50xf32>
    %c0_71 = arith.constant 0 : index
    %c0_72 = arith.constant 0 : index
    %129 = vector.load %arg2[%c0_71, %c0_72] : memref<50x25xf32, #tpu.memory_space<vmem>>, vector<50x25xf32>
    %cst_73 = arith.constant dense<0.000000e+00> : vector<32x25xf32>
    %130 = tpu.matmul %128, %129, %cst_73 {dimension_numbers = #tpu.dot_dimension_numbers<[1], [0], [0], [1], [0, 0, 1, 1], [], []>} : vector<32x50xf32>, vector<50x25xf32>, vector<32x25xf32> -> vector<32x25xf32>
    %c0_74 = arith.constant 0 : index
    %c0_75 = arith.constant 0 : index
    %131 = vector.load %arg3[%c0_74, %c0_75] : memref<1x25xf32, #tpu.memory_space<vmem>>, vector<1x25xf32>
    %132 = vector.broadcast %131 : vector<1x25xf32> to vector<32x25xf32>
    %133 = arith.addf %130, %132 : vector<32x25xf32>
    %cst_76 = arith.constant 0.000000e+00 : f32
    %134 = vector.broadcast %cst_76 : f32 to vector<32x25xf32>
    %135 = arith.maximumf %133, %134 : vector<32x25xf32>
    %c0_77 = arith.constant 0 : index
    %c0_78 = arith.constant 0 : index
    %136 = vector.load %arg4[%c0_77, %c0_78] : memref<1x25xf32, #tpu.memory_space<vmem>>, vector<1x25xf32>
    %137 = vector.broadcast %136 : vector<1x25xf32> to vector<32x25xf32>
    %138 = arith.mulf %135, %137 : vector<32x25xf32>
    %cst_79 = arith.constant dense<0.000000e+00> : vector<32xf32>
    %139 = vector.multi_reduction <add>, %138, %cst_79 [1] : vector<32x25xf32> to vector<32xf32>
    %140 = vector.shape_cast %139 : vector<32xf32> to vector<32x1xf32>
    %c7_i32 = arith.constant 7 : i32
    %141 = vector.broadcast %c7_i32 : i32 to vector<32x8xi32>
    %142 = arith.cmpi eq, %0, %141 : vector<32x8xi32>
    %143 = vector.shape_cast %140 : vector<32x1xf32> to vector<32x1xf32>
    %144 = vector.broadcast %143 : vector<32x1xf32> to vector<32x8xf32>
    %145 = arith.select %142, %144, %127 : vector<32x8xi1>, vector<32x8xf32>
    %cst_80 = arith.constant dense<0xFF800000> : vector<32xf32>
    %146 = vector.multi_reduction <maximumf>, %145, %cst_80 [1] : vector<32x8xf32> to vector<32xf32>
    %147 = vector.shape_cast %146 : vector<32xf32> to vector<32x1xf32>
    %148 = vector.broadcast %147 : vector<32x1xf32> to vector<32x8xf32>
    %149 = arith.subf %145, %148 : vector<32x8xf32>
    %150 = math.exp %149 : vector<32x8xf32>
    %cst_81 = arith.constant dense<0.000000e+00> : vector<32xf32>
    %151 = vector.multi_reduction <add>, %150, %cst_81 [1] : vector<32x8xf32> to vector<32xf32>
    %152 = vector.shape_cast %151 : vector<32xf32> to vector<32x1xf32>
    %153 = tpu.reciprocal %152 : vector<32x1xf32> -> vector<32x1xf32>
    %154 = vector.broadcast %153 : vector<32x1xf32> to vector<32x8xf32>
    %155 = arith.mulf %150, %154 : vector<32x8xf32>
    %c0_82 = arith.constant 0 : index
    %c0_83 = arith.constant 0 : index
    %156 = vector.load %arg5[%c0_82, %c0_83] : memref<32x8xf32, #tpu.memory_space<vmem>>, vector<32x8xf32>
    tpu.vector_store %arg5[%c0_82, %c0_83], %155 {strides = array<i32>} : memref<32x8xf32, #tpu.memory_space<vmem>>, vector<32x8xf32>,
    return
  }
  func.func @transform_0(%arg0: i32) -> (i32, i32) {
    %c0_i32 = arith.constant 0 : i32
    %c0_i32_0 = arith.constant 0 : i32
    return %arg0, %c0_i32 : i32, i32
  }
  func.func @transform_1(%arg0: i32) -> (i32, i32) {
    %c0_i32 = arith.constant 0 : i32
    %c0_i32_0 = arith.constant 0 : i32
    %c0_i32_1 = arith.constant 0 : i32
    return %c0_i32, %c0_i32_0 : i32, i32
  }
  func.func @transform_2(%arg0: i32) -> (i32, i32) {
    %c0_i32 = arith.constant 0 : i32
    %c0_i32_0 = arith.constant 0 : i32
    %c0_i32_1 = arith.constant 0 : i32
    return %c0_i32, %c0_i32_0 : i32, i32
  }
  func.func @transform_3(%arg0: i32) -> (i32, i32) {
    %c0_i32 = arith.constant 0 : i32
    %c0_i32_0 = arith.constant 0 : i32
    %c0_i32_1 = arith.constant 0 : i32
    return %c0_i32, %c0_i32_0 : i32, i32
  }
  func.func @transform_4(%arg0: i32) -> (i32, i32) {
    %c0_i32 = arith.constant 0 : i32
    %c0_i32_0 = arith.constant 0 : i32
    return %arg0, %c0_i32 : i32, i32
  }
}

</mosaic_0001>

<llo_original>
// kernel: tpu_custom_call.1
$region0: #{tpu_custom_call.1}
  #allocation0 [shape = 'u32[]', space=smem, size = 0x4, offset = 0x4, fixed_abs, tag = 'smem constant byte address 0x4 - core index']
  #allocation1 [shape = 'u32[72,128]{1,0:T(1,128)}', space=vmem, size = 0x9000, scoped, tag = 'internal scratch']
  %s0 = inlined_call_operand.hbm [shape: f32[64,400], index: 0, kind: input, shape index: {}]
  %s1 = inlined_call_operand.vmem [shape: f32[50,25], index: 1, kind: input, shape index: {}]
  %s2 = inlined_call_operand.vmem [shape: f32[1,25], index: 2, kind: input, shape index: {}]
  %s3 = inlined_call_operand.vmem [shape: f32[1,25], index: 3, kind: input, shape index: {}]
  %s4 = inlined_call_operand.vmem [shape: f32[64,8], index: 4, kind: output, shape index: {}]
  %s5 = sld [smem:[#allocation0]]
  $region53: #{tpu_custom_call.1} parent=0
    _
  %s7 = ssub.s32 1, %s5
  %s8 = scalar_select 0, %s7, %s5
  $region1: #{tpu_custom_call.1} parent=0
    #allocation2 [shape = 'u8[131072]{0}', space=vmem, size = 0x20000, scoped, tag = 'input window, operand 0']
    #allocation3 [shape = 's32[2]{0}', space=sflag, size = 0x8, scoped, tag = 'scoped memory for tpu_custom_call.1']
    %9 = vsyncpa [#allocation3], 0
    %s10 = scalar_lea.sflag [#allocation3], 1
    %11 = vsyncpa %s10, 0
    loop: start=0, step=1, limit=4
    $region2: #{tpu_custom_call.1} parent=1 // loop_pre_header
      _
    $region3: #{tpu_custom_call.1} parent=1 // loop_header
      %s13 = sphi 0, %s17
      %p14 = scmp.ge.s32.totalorder %s13, 4
      %s23 = sphi 0, %s25
      %s26 = sphi 0, %s23
      %s27 = sphi 0, %s26
      %s43 = sphi 0, %s27
      %s47 = sphi 0, %s47
      %s49 = sphi 0, %s47
      %s50 = sphi 0, %s49
      %s64 = sphi 0, %s50
      %s68 = sphi 0, %s68
      %s70 = sphi 0, %s68
      %s71 = sphi 0, %s70
      %s85 = sphi 0, %s71
      %s89 = sphi 0, %s89
      %s91 = sphi 0, %s89
      %s92 = sphi 0, %s91
      %s106 = sphi 0, %s92
      %s112 = sphi 0, %s114
      %s115 = sphi 0, %s112
      %s116 = sphi 0, %s115
      %s132 = sphi 0, %s116
    $region4: #{tpu_custom_call.1} parent=1 // loop_header_branch
      %16 = sbr.rel (%p14) target = $region8
    $region5: #{tpu_custom_call.1} parent=1 // loop_body
      %s18 = ssub.s32 %s13, 1
      %s19 = ssub.s32 %s13, 2
      %s20 = sadd.s32 %s13, 1
      %s21 = ssub.s32 %s13, %s20
      %p22 = scmp.eq.s32.totalorder %s21, 0
      %s24 = sadd.s32 %s23, 1
      %s25 = scalar_select %p22, %s23, %s24
      %p28 = pneg %p22
      %p29 = scmp.eq.s32.totalorder %s13, 1
      %p30 = por %p28, %p29
      %p31 = scmp.ne.s32.totalorder %s23, %s26
      %p32 = scmp.eq.s32.totalorder %s13, 0
      %p33 = por %p31, %p32
      %p34 = scmp.ne.s32.totalorder %s23, %s26
      %p35 = scmp.eq.s32.totalorder %s18, 1
      %p36 = por %p34, %p35
      %p37 = scmp.ne.s32.totalorder %s26, %s27
      %p38 = scmp.eq.s32.totalorder %s18, 0
      %p39 = por %p37, %p38
      %p40 = scmp.ne.s32.totalorder %s26, %s27
      %p41 = scmp.eq.s32.totalorder %s19, 1
      %p42 = por %p40, %p41
      %p44 = scmp.ne.s32.totalorder %s27, %s43
      %p45 = scmp.eq.s32.totalorder %s19, 0
      %p46 = por %p44, %p45
      %s48 = sadd.s32 %s47, 1
      %p51 = scmp.eq.s32.totalorder %s13, 1
      %p52 = scmp.ne.s32.totalorder %s47, %s49
      %p53 = scmp.eq.s32.totalorder %s13, 0
      %p54 = por %p52, %p53
      %p55 = scmp.ne.s32.totalorder %s47, %s49
      %p56 = scmp.eq.s32.totalorder %s18, 1
      %p57 = por %p55, %p56
      %p58 = scmp.ne.s32.totalorder %s49, %s50
      %p59 = scmp.eq.s32.totalorder %s18, 0
      %p60 = por %p58, %p59
      %p61 = scmp.ne.s32.totalorder %s49, %s50
      %p62 = scmp.eq.s32.totalorder %s19, 1
      %p63 = por %p61, %p62
      %p65 = scmp.ne.s32.totalorder %s50, %s64
      %p66 = scmp.eq.s32.totalorder %s19, 0
      %p67 = por %p65, %p66
      %s69 = sadd.s32 %s68, 1
      %p72 = scmp.eq.s32.totalorder %s13, 1
      %p73 = scmp.ne.s32.totalorder %s68, %s70
      %p74 = scmp.eq.s32.totalorder %s13, 0
      %p75 = por %p73, %p74
      %p76 = scmp.ne.s32.totalorder %s68, %s70
      %p77 = scmp.eq.s32.totalorder %s18, 1
      %p78 = por %p76, %p77
      %p79 = scmp.ne.s32.totalorder %s70, %s71
      %p80 = scmp.eq.s32.totalorder %s18, 0
      %p81 = por %p79, %p80
      %p82 = scmp.ne.s32.totalorder %s70, %s71
      %p83 = scmp.eq.s32.totalorder %s19, 1
      %p84 = por %p82, %p83
      %p86 = scmp.ne.s32.totalorder %s71, %s85
      %p87 = scmp.eq.s32.totalorder %s19, 0
      %p88 = por %p86, %p87
      %s90 = sadd.s32 %s89, 1
      %p93 = scmp.eq.s32.totalorder %s13, 1
      %p94 = scmp.ne.s32.totalorder %s89, %s91
      %p95 = scmp.eq.s32.totalorder %s13, 0
      %p96 = por %p94, %p95
      %p97 = scmp.ne.s32.totalorder %s89, %s91
      %p98 = scmp.eq.s32.totalorder %s18, 1
      %p99 = por %p97, %p98
      %p100 = scmp.ne.s32.totalorder %s91, %s92
      %p101 = scmp.eq.s32.totalorder %s18, 0
      %p102 = por %p100, %p101
      %p103 = scmp.ne.s32.totalorder %s91, %s92
      %p104 = scmp.eq.s32.totalorder %s19, 1
      %p105 = por %p103, %p104
      %p107 = scmp.ne.s32.totalorder %s92, %s106
      %p108 = scmp.eq.s32.totalorder %s19, 0
      %p109 = por %p107, %p108
      %s110 = ssub.s32 %s13, %s20
      %p111 = scmp.eq.s32.totalorder %s110, 0
      %s113 = sadd.s32 %s112, 1
      %s114 = scalar_select %p111, %s112, %s113
      %p117 = pneg %p111
      %p118 = scmp.eq.s32.totalorder %s13, 1
      %p119 = por %p117, %p118
      %p120 = scmp.ne.s32.totalorder %s112, %s115
      %p121 = scmp.eq.s32.totalorder %s13, 0
      %p122 = por %p120, %p121
      %p123 = scmp.ne.s32.totalorder %s112, %s115
      %p124 = scmp.eq.s32.totalorder %s18, 1
      %p125 = por %p123, %p124
      %p126 = scmp.ne.s32.totalorder %s115, %s116
      %p127 = scmp.eq.s32.totalorder %s18, 0
      %p128 = por %p126, %p127
      %p129 = scmp.ne.s32.totalorder %s115, %s116
      %p130 = scmp.eq.s32.totalorder %s19, 1
      %p131 = por %p129, %p130
      %p133 = scmp.ne.s32.totalorder %s116, %s132
      %p134 = scmp.eq.s32.totalorder %s19, 0
      %p135 = por %p133, %p134
      %p136 = scmp.le.s32.totalorder 1, %s13
      %p137 = scmp.lt.s32.totalorder %s13, 3
      %p138 = pnand %p136, %p137
      %p139 = pneg %p138
      // Predicated region
      $region9: #{tpu_custom_call.1} parent=5 // pred_check
        _
      $region10: #{tpu_custom_call.1} parent=5 // pred_check_branch
        %141 = sbr.rel (%p138) target = $region12
      $region11: #{tpu_custom_call.1} parent=5 // pred_region
        %s142 = ssub.s32 %s13, 1
        // Predicated region
        $region13: #{tpu_custom_call.1} parent=11 // pred_check
          %p143 = pneg %p60
        $region14: #{tpu_custom_call.1} parent=11 // pred_check_branch
          %145 = sbr.rel (%p143) target = $region16
        $region15: #{tpu_custom_call.1} parent=11 // pred_region
          _
        $region16: #{tpu_custom_call.1} parent=11 // pred_fallthru
          _
        // Predicated region
        $region17: #{tpu_custom_call.1} parent=11 // pred_check
          %p146 = pneg %p81
        $region18: #{tpu_custom_call.1} parent=11 // pred_check_branch
          %148 = sbr.rel (%p146) target = $region20
        $region19: #{tpu_custom_call.1} parent=11 // pred_region
          _
        $region20: #{tpu_custom_call.1} parent=11 // pred_fallthru
          _
        // Predicated region
        $region21: #{tpu_custom_call.1} parent=11 // pred_check
          %p149 = pneg %p102
        $region22: #{tpu_custom_call.1} parent=11 // pred_check_branch
          %151 = sbr.rel (%p149) target = $region24
        $region23: #{tpu_custom_call.1} parent=11 // pred_region
          _
        $region24: #{tpu_custom_call.1} parent=11 // pred_fallthru
          _
      $region12: #{tpu_custom_call.1} parent=5 // pred_fallthru
        _
      %p152 = scmp.lt.s32.totalorder %s13, 2
      // Predicated region
      $region25: #{tpu_custom_call.1} parent=5 // pred_check
        %p153 = pneg %p152
      $region26: #{tpu_custom_call.1} parent=5 // pred_check_branch
        %155 = sbr.rel (%p153) target = $region28
      $region27: #{tpu_custom_call.1} parent=5 // pred_region
        // Predicated region
        $region29: #{tpu_custom_call.1} parent=27 // pred_check
          %p156 = pneg %p33
        $region30: #{tpu_custom_call.1} parent=27 // pred_check_branch
          %158 = sbr.rel (%p156) target = $region32
        $region31: #{tpu_custom_call.1} parent=27 // pred_region
          %s159 = sand.u32 %s23, 1
          %s160 = scalar_lea.sflag [#allocation3], %s159
          %s161 = sand.u32 %s23, 1
          %s162 = smul.addr %s161, 128
          %s163 = scalar_lea.vmem [#allocation2], %s162
          %s164 = smul.u32 4, %s13
          %166 = vsyncadd %s160, 0
          %s167 = smul.addr %s164, 4
          %s168 = smul.addr %s167, 8
          %s169 = scalar_lea.hbm %s0, %s168
          %s170 = sshll.u32 %s169, 4
          %s171 = int_to_ptr.hbm [resolvable:$true] %s170
          %s172 = sshll.u32 %s163, 4
          %s173 = int_to_ptr.vmem [resolvable:$true] %s172
          %178 = dma.hbm_to_vmem [thread:$0]  %s171, 2048, %s173, %s160, 512, 512, 32
        $region32: #{tpu_custom_call.1} parent=27 // pred_fallthru
          _
      $region28: #{tpu_custom_call.1} parent=5 // pred_fallthru
        _
      %p179 = scmp.le.s32.totalorder 1, %s13
      %p180 = scmp.lt.s32.totalorder %s13, 3
      %p181 = pnand %p179, %p180
      %p182 = pneg %p181
      // Predicated region
      $region33: #{tpu_custom_call.1} parent=5 // pred_check
        _
      $region34: #{tpu_custom_call.1} parent=5 // pred_check_branch
        %184 = sbr.rel (%p181) target = $region36
      $region35: #{tpu_custom_call.1} parent=5 // pred_region
        %s185 = ssub.s32 %s13, 1
        %s186 = sand.u32 %s26, 1
        %s187 = scalar_lea.sflag [#allocation3], %s186
        %s188 = sand.u32 %s26, 1
        %s189 = smul.addr %s188, 128
        %s190 = scalar_lea.vmem [#allocation2], %s189
        // Predicated region
        $region37: #{tpu_custom_call.1} parent=35 // pred_check
          %p191 = pneg %p39
        $region38: #{tpu_custom_call.1} parent=35 // pred_check_branch
          %193 = sbr.rel (%p191) target = $region40
        $region39: #{tpu_custom_call.1} parent=35 // pred_region
          %195 = dma.done %s187, 2048
        $region40: #{tpu_custom_call.1} parent=35 // pred_fallthru
          _
        %s196 = sand.u32 %s26, 1
        %s197 = scalar_lea.sflag [#allocation3], %s196
        %s198 = sand.u32 %s26, 1
        %s199 = smul.addr %s198, 128
        %s200 = scalar_lea.vmem [#allocation2], %s199
        %p201 = pneg %p39
        %p202 = pneg %p36
        %p203 = pneg %p60
        %p204 = pneg %p57
        %p205 = pneg %p81
        %p206 = pneg %p78
        %p207 = pneg %p102
        %p208 = pneg %p99
        %p209 = pneg %p128
        %p210 = pneg %p125
        %s211 = smul.u32 4, %s18
        %p212 = scmp.lt.s32.totalorder %s211, 7
        %s213 = scalar_select %p212, %s211, 7
        %s214 = smul.addr %s213, 8
        %s215 = scalar_lea.vmem %s4, %s214
        %s216 = smul.u32 4, %s18
        %s217 = smul.u32 4, %s18
        %p218 = scmp.lt.s32.totalorder %s217, 7
        %s219 = scalar_select %p218, %s217, 7
        %s220 = smul.addr %s219, 8
        %s221 = scalar_lea.vmem %s4, %s220
        %s222 = smul.u32 4, %s18
        %v223 = vlaneseq
        %v224 = vand.u32 %v223, 127
        %v225 = vld [vmem:[%s190] sm:$0xff]
        %v226 = vld [vmem:[%s190 + $0x20] sm:$0xff]
        %v227 = vld [vmem:[%s190 + $0x40] sm:$0xff]
        %v228 = vld [vmem:[%s190 + $0x60] sm:$0xff]
        %v229 = vld [vmem:[%s1] sm:$0xff]
        %v230 = vld [vmem:[%s1 + $0x8] sm:$0xff]
        %v231 = vld [vmem:[%s1 + $0x10] sm:$0xff]
        %v232 = vld [vmem:[%s1 + $0x18] sm:$0xff]
        %v233 = vld [vmem:[%s1 + $0x20] sm:$0xff]
        %v234 = vld [vmem:[%s1 + $0x28] sm:$0xff]
        %v235 = vld [vmem:[%s1 + $0x30] sm:$0x3]
        %v236 = vld [vmem:[%s2] sm:$0x1]
        %v238 = vperm.slane %v236, 0
        %vm240 = vcmask 408576
        %v242 = vsel %vm240, %v225, 0
        %v245 = vsel %vm240, %v226, 0
        %v248 = vsel %vm240, %v227, 0
        %v251 = vsel %vm240, %v228, 0
        %vm253 = vcmask 1041408
        %v255 = vsel %vm253, %v235, 0
        %257 = vmatpush.msra.mxu0 0.0
        %258 = vmatpush.msra.mxu0 0.0
        %259 = vmatpush.msra.mxu0 0.0
        %260 = vmatpush.msra.mxu0 0.0
        %261 = vmatpush.msra.mxu0 0.0
        %262 = vmatpush.msra.mxu0 0.0
        %263 = vmatpush.msra.mxu0 0.0
        %264 = vmatpush.msra.mxu0 0.0
        %265 = vmatpush.msra.mxu0 0.0
        %266 = vmatpush.msra.mxu0 %v255
        %267 = vmatpush.msra.mxu0 %v234
        %268 = vmatpush.msra.mxu0 %v233
        %269 = vmatpush.msra.mxu0 %v232
        %270 = vmatpush.msra.mxu0 %v231
        %271 = vmatpush.msra.mxu0 %v230
        %272 = vmatpush.msra.mxu0 %v229
        %273 = vmatmul.f32.gmra.mxu0 %v242
        %v274 = vpop.f32.mrf.mxu0
        %v275 = vadd.f32 %v238, %v274
        %276 = vmatmul.f32.gmra.mxu0 %v245
        %v277 = vpop.f32.mrf.mxu0
        %v278 = vadd.f32 %v238, %v277
        %279 = vmatmul.f32.gmra.mxu0 %v248
        %v280 = vpop.f32.mrf.mxu0
        %v281 = vadd.f32 %v238, %v280
        %282 = vmatmul.f32.gmra.mxu0 %v251
        %v283 = vpop.f32.mrf.mxu0
        %v284 = vadd.f32 %v238, %v283
        %285 = vdwg.mxu0
        %v286 = vmax.f32 %v275, 0.0
        %v287 = vmax.f32 %v278, 0.0
        %v288 = vmax.f32 %v281, 0.0
        %v289 = vmax.f32 %v284, 0.0
        %v290 = vld [vmem:[%s3] sm:$0x1]
        %v292 = vperm.slane %v290, 0
        %v294 = vmul.f32 %v286, %v292
        %v295 = vmul.f32 %v287, %v292
        %v296 = vmul.f32 %v288, %v292
        %v297 = vmul.f32 %v289, %v292
        %vm298 = vcmask 203776
        %v299 = vsel %vm298, %v294, 0.0
        %300 = vadd.xlane.f32.xlu0 %v299
        %v301 = vpop.xlane.xlu0 %300
        %v302 = vsel %vm298, %v295, 0.0
        %303 = vadd.xlane.f32.xlu0 %v302
        %v304 = vpop.xlane.xlu0 %303
        %v305 = vsel %vm298, %v296, 0.0
        %306 = vadd.xlane.f32.xlu0 %v305
        %v307 = vpop.xlane.xlu0 %306
        %v308 = vsel %vm298, %v297, 0.0
        %309 = vadd.xlane.f32.xlu0 %v308
        %v310 = vpop.xlane.xlu0 %309
        %vm311 = vcmp.eq.s32.totalorder %v224, 0
        %v312 = vsel %vm311, %v301, 0.0
        %v313 = vsel %vm311, %v304, 0.0
        %v314 = vsel %vm311, %v307, 0.0
        %v315 = vsel %vm311, %v310, 0.0
        %316 = vrot.lane.b32.xlu0 %v225, 78
        %v317 = vpop.permute.xlu0 %316
        %318 = vrot.lane.b32.xlu0 %v226, 78
        %v319 = vpop.permute.xlu0 %318
        %320 = vrot.lane.b32.xlu0 %v227, 78
        %v321 = vpop.permute.xlu0 %320
        %322 = vrot.lane.b32.xlu0 %v228, 78
        %v323 = vpop.permute.xlu0 %322
        %v324 = vsel %vm240, %v317, 0
        %v326 = vsel %vm240, %v319, 0
        %v328 = vsel %vm240, %v321, 0
        %v330 = vsel %vm240, %v323, 0
        %332 = vmatpush.msra.mxu0 0.0
        %333 = vmatpush.msra.mxu0 0.0
        %334 = vmatpush.msra.mxu0 0.0
        %335 = vmatpush.msra.mxu0 0.0
        %336 = vmatpush.msra.mxu0 0.0
        %337 = vmatpush.msra.mxu0 0.0
        %338 = vmatpush.msra.mxu0 0.0
        %339 = vmatpush.msra.mxu0 0.0
        %340 = vmatpush.msra.mxu0 0.0
        %341 = vmatpush.msra.mxu0 %v255
        %342 = vmatpush.msra.mxu0 %v234
        %343 = vmatpush.msra.mxu0 %v233
        %344 = vmatpush.msra.mxu0 %v232
        %345 = vmatpush.msra.mxu0 %v231
        %346 = vmatpush.msra.mxu0 %v230
        %347 = vmatpush.msra.mxu0 %v229
        %348 = vmatmul.f32.gmra.mxu0 %v324
        %v349 = vpop.f32.mrf.mxu0
        %v350 = vadd.f32 %v238, %v349
        %351 = vmatmul.f32.gmra.mxu0 %v326
        %v352 = vpop.f32.mrf.mxu0
        %v353 = vadd.f32 %v238, %v352
        %354 = vmatmul.f32.gmra.mxu0 %v328
        %v355 = vpop.f32.mrf.mxu0
        %v356 = vadd.f32 %v238, %v355
        %357 = vmatmul.f32.gmra.mxu0 %v330
        %v358 = vpop.f32.mrf.mxu0
        %v359 = vadd.f32 %v238, %v358
        %360 = vdwg.mxu0
        %v361 = vmax.f32 %v350, 0.0
        %v362 = vmax.f32 %v353, 0.0
        %v363 = vmax.f32 %v356, 0.0
        %v364 = vmax.f32 %v359, 0.0
        %v365 = vmul.f32 %v361, %v292
        %v366 = vmul.f32 %v362, %v292
        %v367 = vmul.f32 %v363, %v292
        %v368 = vmul.f32 %v364, %v292
        %v369 = vsel %vm298, %v365, 0.0
        %370 = vadd.xlane.f32.xlu0 %v369
        %v371 = vpop.xlane.xlu0 %370
        %v372 = vsel %vm298, %v366, 0.0
        %373 = vadd.xlane.f32.xlu0 %v372
        %v374 = vpop.xlane.xlu0 %373
        %v375 = vsel %vm298, %v367, 0.0
        %376 = vadd.xlane.f32.xlu0 %v375
        %v377 = vpop.xlane.xlu0 %376
        %v378 = vsel %vm298, %v368, 0.0
        %379 = vadd.xlane.f32.xlu0 %v378
        %v380 = vpop.xlane.xlu0 %379
        %vm381 = vcmp.eq.s32.totalorder %v224, 1
        %v382 = vsel %vm381, %v371, %v312
        %v383 = vsel %vm381, %v374, %v313
        %v384 = vsel %vm381, %v377, %v314
        %v385 = vsel %vm381, %v380, %v315
        %v386 = vld [vmem:[%s190] sm:$0xff]
        %v387 = vld [vmem:[%s190 + $0x8] sm:$0xff]
        %v388 = vld [vmem:[%s190 + $0x20] sm:$0xff]
        %v389 = vld [vmem:[%s190 + $0x28] sm:$0xff]
        %v390 = vld [vmem:[%s190 + $0x40] sm:$0xff]
        %v391 = vld [vmem:[%s190 + $0x48] sm:$0xff]
        %v392 = vld [vmem:[%s190 + $0x60] sm:$0xff]
        %v393 = vld [vmem:[%s190 + $0x68] sm:$0xff]
        %402 = vrot.lane.b32.xlu0 %v386, 28
        %v403 = vpop.permute.xlu0 %402
        %404 = vrot.lane.b32.xlu0 %v387, 28
        %v405 = vpop.permute.xlu0 %404
        %406 = vrot.lane.b32.xlu0 %v388, 28
        %v407 = vpop.permute.xlu0 %406
        %408 = vrot.lane.b32.xlu0 %v389, 28
        %v409 = vpop.permute.xlu0 %408
        %410 = vrot.lane.b32.xlu0 %v390, 28
        %v411 = vpop.permute.xlu0 %410
        %412 = vrot.lane.b32.xlu0 %v391, 28
        %v413 = vpop.permute.xlu0 %412
        %414 = vrot.lane.b32.xlu0 %v392, 28
        %v415 = vpop.permute.xlu0 %414
        %416 = vrot.lane.b32.xlu0 %v393, 28
        %v417 = vpop.permute.xlu0 %416
        %vm418 = vcmask 228352
        %v419 = vsel %vm418, %v403, %v405
        %v420 = vsel %vm418, %v407, %v409
        %v421 = vsel %vm418, %v411, %v413
        %v422 = vsel %vm418, %v415, %v417
        %v423 = vsel %vm240, %v419, 0
        %v425 = vsel %vm240, %v420, 0
        %v427 = vsel %vm240, %v421, 0
        %v429 = vsel %vm240, %v422, 0
        %431 = vmatpush.msra.mxu0 0.0
        %432 = vmatpush.msra.mxu0 0.0
        %433 = vmatpush.msra.mxu0 0.0
        %434 = vmatpush.msra.mxu0 0.0
        %435 = vmatpush.msra.mxu0 0.0
        %436 = vmatpush.msra.mxu0 0.0
        %437 = vmatpush.msra.mxu0 0.0
        %438 = vmatpush.msra.mxu0 0.0
        %439 = vmatpush.msra.mxu0 0.0
        %440 = vmatpush.msra.mxu0 %v255
        %441 = vmatpush.msra.mxu0 %v234
        %442 = vmatpush.msra.mxu0 %v233
        %443 = vmatpush.msra.mxu0 %v232
        %444 = vmatpush.msra.mxu0 %v231
        %445 = vmatpush.msra.mxu0 %v230
        %446 = vmatpush.msra.mxu0 %v229
        %447 = vmatmul.f32.gmra.mxu0 %v423
        %v448 = vpop.f32.mrf.mxu0
        %v449 = vadd.f32 %v238, %v448
        %450 = vmatmul.f32.gmra.mxu0 %v425
        %v451 = vpop.f32.mrf.mxu0
        %v452 = vadd.f32 %v238, %v451
        %453 = vmatmul.f32.gmra.mxu0 %v427
        %v454 = vpop.f32.mrf.mxu0
        %v455 = vadd.f32 %v238, %v454
        %456 = vmatmul.f32.gmra.mxu0 %v429
        %v457 = vpop.f32.mrf.mxu0
        %v458 = vadd.f32 %v238, %v457
        %459 = vdwg.mxu0
        %v460 = vmax.f32 %v449, 0.0
        %v461 = vmax.f32 %v452, 0.0
        %v462 = vmax.f32 %v455, 0.0
        %v463 = vmax.f32 %v458, 0.0
        %v464 = vmul.f32 %v460, %v292
        %v465 = vmul.f32 %v461, %v292
        %v466 = vmul.f32 %v462, %v292
        %v467 = vmul.f32 %v463, %v292
        %v468 = vsel %vm298, %v464, 0.0
        %469 = vadd.xlane.f32.xlu0 %v468
        %v470 = vpop.xlane.xlu0 %469
        %v471 = vsel %vm298, %v465, 0.0
        %472 = vadd.xlane.f32.xlu0 %v471
        %v473 = vpop.xlane.xlu0 %472
        %v474 = vsel %vm298, %v466, 0.0
        %475 = vadd.xlane.f32.xlu0 %v474
        %v476 = vpop.xlane.xlu0 %475
        %v477 = vsel %vm298, %v467, 0.0
        %478 = vadd.xlane.f32.xlu0 %v477
        %v479 = vpop.xlane.xlu0 %478
        %vm480 = vcmp.eq.s32.totalorder %v224, 2
        %v481 = vsel %vm480, %v470, %v382
        %v482 = vsel %vm480, %v473, %v383
        %v483 = vsel %vm480, %v476, %v384
        %v484 = vsel %vm480, %v479, %v385
        %485 = vrot.lane.b32.xlu0 %v387, 106
        %v486 = vpop.permute.xlu0 %485
        %487 = vrot.lane.b32.xlu0 %v389, 106
        %v488 = vpop.permute.xlu0 %487
        %489 = vrot.lane.b32.xlu0 %v391, 106
        %v490 = vpop.permute.xlu0 %489
        %491 = vrot.lane.b32.xlu0 %v393, 106
        %v492 = vpop.permute.xlu0 %491
        %v493 = vsel %vm240, %v486, 0
        %v495 = vsel %vm240, %v488, 0
        %v497 = vsel %vm240, %v490, 0
        %v499 = vsel %vm240, %v492, 0
        %501 = vmatpush.msra.mxu0 0.0
        %502 = vmatpush.msra.mxu0 0.0
        %503 = vmatpush.msra.mxu0 0.0
        %504 = vmatpush.msra.mxu0 0.0
        %505 = vmatpush.msra.mxu0 0.0
        %506 = vmatpush.msra.mxu0 0.0
        %507 = vmatpush.msra.mxu0 0.0
        %508 = vmatpush.msra.mxu0 0.0
        %509 = vmatpush.msra.mxu0 0.0
        %510 = vmatpush.msra.mxu0 %v255
        %511 = vmatpush.msra.mxu0 %v234
        %512 = vmatpush.msra.mxu0 %v233
        %513 = vmatpush.msra.mxu0 %v232
        %514 = vmatpush.msra.mxu0 %v231
        %515 = vmatpush.msra.mxu0 %v230
        %516 = vmatpush.msra.mxu0 %v229
        %517 = vmatmul.f32.gmra.mxu0 %v493
        %v518 = vpop.f32.mrf.mxu0
        %v519 = vadd.f32 %v238, %v518
        %520 = vmatmul.f32.gmra.mxu0 %v495
        %v521 = vpop.f32.mrf.mxu0
        %v522 = vadd.f32 %v238, %v521
        %523 = vmatmul.f32.gmra.mxu0 %v497
        %v524 = vpop.f32.mrf.mxu0
        %v525 = vadd.f32 %v238, %v524
        %526 = vmatmul.f32.gmra.mxu0 %v499
        %v527 = vpop.f32.mrf.mxu0
        %v528 = vadd.f32 %v238, %v527
        %529 = vdwg.mxu0
        %v530 = vmax.f32 %v519, 0.0
        %v531 = vmax.f32 %v522, 0.0
        %v532 = vmax.f32 %v525, 0.0
        %v533 = vmax.f32 %v528, 0.0
        %v534 = vmul.f32 %v530, %v292
        %v535 = vmul.f32 %v531, %v292
        %v536 = vmul.f32 %v532, %v292
        %v537 = vmul.f32 %v533, %v292
        %v538 = vsel %vm298, %v534, 0.0
        %539 = vadd.xlane.f32.xlu0 %v538
        %v540 = vpop.xlane.xlu0 %539
        %v541 = vsel %vm298, %v535, 0.0
        %542 = vadd.xlane.f32.xlu0 %v541
        %v543 = vpop.xlane.xlu0 %542
        %v544 = vsel %vm298, %v536, 0.0
        %545 = vadd.xlane.f32.xlu0 %v544
        %v546 = vpop.xlane.xlu0 %545
        %v547 = vsel %vm298, %v537, 0.0
        %548 = vadd.xlane.f32.xlu0 %v547
        %v549 = vpop.xlane.xlu0 %548
        %vm550 = vcmp.eq.s32.totalorder %v224, 3
        %v551 = vsel %vm550, %v540, %v481
        %v552 = vsel %vm550, %v543, %v482
        %v553 = vsel %vm550, %v546, %v483
        %v554 = vsel %vm550, %v549, %v484
        %555 = vrot.lane.b32.xlu0 %v387, 56
        %v556 = vpop.permute.xlu0 %555
        %557 = vrot.lane.b32.xlu0 %v389, 56
        %v558 = vpop.permute.xlu0 %557
        %559 = vrot.lane.b32.xlu0 %v391, 56
        %v560 = vpop.permute.xlu0 %559
        %561 = vrot.lane.b32.xlu0 %v393, 56
        %v562 = vpop.permute.xlu0 %561
        %v563 = vsel %vm240, %v556, 0
        %v565 = vsel %vm240, %v558, 0
        %v567 = vsel %vm240, %v560, 0
        %v569 = vsel %vm240, %v562, 0
        %571 = vmatpush.msra.mxu0 0.0
        %572 = vmatpush.msra.mxu0 0.0
        %573 = vmatpush.msra.mxu0 0.0
        %574 = vmatpush.msra.mxu0 0.0
        %575 = vmatpush.msra.mxu0 0.0
        %576 = vmatpush.msra.mxu0 0.0
        %577 = vmatpush.msra.mxu0 0.0
        %578 = vmatpush.msra.mxu0 0.0
        %579 = vmatpush.msra.mxu0 0.0
        %580 = vmatpush.msra.mxu0 %v255
        %581 = vmatpush.msra.mxu0 %v234
        %582 = vmatpush.msra.mxu0 %v233
        %583 = vmatpush.msra.mxu0 %v232
        %584 = vmatpush.msra.mxu0 %v231
        %585 = vmatpush.msra.mxu0 %v230
        %586 = vmatpush.msra.mxu0 %v229
        %587 = vmatmul.f32.gmra.mxu0 %v563
        %v588 = vpop.f32.mrf.mxu0
        %v589 = vadd.f32 %v238, %v588
        %590 = vmatmul.f32.gmra.mxu0 %v565
        %v591 = vpop.f32.mrf.mxu0
        %v592 = vadd.f32 %v238, %v591
        %593 = vmatmul.f32.gmra.mxu0 %v567
        %v594 = vpop.f32.mrf.mxu0
        %v595 = vadd.f32 %v238, %v594
        %596 = vmatmul.f32.gmra.mxu0 %v569
        %v597 = vpop.f32.mrf.mxu0
        %v598 = vadd.f32 %v238, %v597
        %599 = vdwg.mxu0
        %v600 = vmax.f32 %v589, 0.0
        %v601 = vmax.f32 %v592, 0.0
        %v602 = vmax.f32 %v595, 0.0
        %v603 = vmax.f32 %v598, 0.0
        %v604 = vmul.f32 %v600, %v292
        %v605 = vmul.f32 %v601, %v292
        %v606 = vmul.f32 %v602, %v292
        %v607 = vmul.f32 %v603, %v292
        %v608 = vsel %vm298, %v604, 0.0
        %609 = vadd.xlane.f32.xlu0 %v608
        %v610 = vpop.xlane.xlu0 %609
        %v611 = vsel %vm298, %v605, 0.0
        %612 = vadd.xlane.f32.xlu0 %v611
        %v613 = vpop.xlane.xlu0 %612
        %v614 = vsel %vm298, %v606, 0.0
        %615 = vadd.xlane.f32.xlu0 %v614
        %v616 = vpop.xlane.xlu0 %615
        %v617 = vsel %vm298, %v607, 0.0
        %618 = vadd.xlane.f32.xlu0 %v617
        %v619 = vpop.xlane.xlu0 %618
        %vm620 = vcmp.eq.s32.totalorder %v224, 4
        %v621 = vsel %vm620, %v610, %v551
        %v622 = vsel %vm620, %v613, %v552
        %v623 = vsel %vm620, %v616, %v553
        %v624 = vsel %vm620, %v619, %v554
        %v625 = vld [vmem:[%s190 + $0x8] sm:$0xff]
        %v626 = vld [vmem:[%s190 + $0x10] sm:$0xff]
        %v627 = vld [vmem:[%s190 + $0x28] sm:$0xff]
        %v628 = vld [vmem:[%s190 + $0x30] sm:$0xff]
        %v629 = vld [vmem:[%s190 + $0x48] sm:$0xff]
        %v630 = vld [vmem:[%s190 + $0x50] sm:$0xff]
        %v631 = vld [vmem:[%s190 + $0x68] sm:$0xff]
        %v632 = vld [vmem:[%s190 + $0x70] sm:$0xff]
        %641 = vrot.lane.b32.xlu0 %v625, 6
        %v642 = vpop.permute.xlu0 %641
        %643 = vrot.lane.b32.xlu0 %v626, 6
        %v644 = vpop.permute.xlu0 %643
        %645 = vrot.lane.b32.xlu0 %v627, 6
        %v646 = vpop.permute.xlu0 %645
        %647 = vrot.lane.b32.xlu0 %v628, 6
        %v648 = vpop.permute.xlu0 %647
        %649 = vrot.lane.b32.xlu0 %v629, 6
        %v650 = vpop.permute.xlu0 %649
        %651 = vrot.lane.b32.xlu0 %v630, 6
        %v652 = vpop.permute.xlu0 %651
        %653 = vrot.lane.b32.xlu0 %v631, 6
        %v654 = vpop.permute.xlu0 %653
        %655 = vrot.lane.b32.xlu0 %v632, 6
        %v656 = vpop.permute.xlu0 %655
        %vm657 = vcmask 48128
        %v658 = vsel %vm657, %v642, %v644
        %v659 = vsel %vm657, %v646, %v648
        %v660 = vsel %vm657, %v650, %v652
        %v661 = vsel %vm657, %v654, %v656
        %v662 = vsel %vm240, %v658, 0
        %v664 = vsel %vm240, %v659, 0
        %v666 = vsel %vm240, %v660, 0
        %v668 = vsel %vm240, %v661, 0
        %670 = vmatpush.msra.mxu0 0.0
        %671 = vmatpush.msra.mxu0 0.0
        %672 = vmatpush.msra.mxu0 0.0
        %673 = vmatpush.msra.mxu0 0.0
        %674 = vmatpush.msra.mxu0 0.0
        %675 = vmatpush.msra.mxu0 0.0
        %676 = vmatpush.msra.mxu0 0.0
        %677 = vmatpush.msra.mxu0 0.0
        %678 = vmatpush.msra.mxu0 0.0
        %679 = vmatpush.msra.mxu0 %v255
        %680 = vmatpush.msra.mxu0 %v234
        %681 = vmatpush.msra.mxu0 %v233
        %682 = vmatpush.msra.mxu0 %v232
        %683 = vmatpush.msra.mxu0 %v231
        %684 = vmatpush.msra.mxu0 %v230
        %685 = vmatpush.msra.mxu0 %v229
        %686 = vmatmul.f32.gmra.mxu0 %v662
        %v687 = vpop.f32.mrf.mxu0
        %v688 = vadd.f32 %v238, %v687
        %689 = vmatmul.f32.gmra.mxu0 %v664
        %v690 = vpop.f32.mrf.mxu0
        %v691 = vadd.f32 %v238, %v690
        %692 = vmatmul.f32.gmra.mxu0 %v666
        %v693 = vpop.f32.mrf.mxu0
        %v694 = vadd.f32 %v238, %v693
        %695 = vmatmul.f32.gmra.mxu0 %v668
        %v696 = vpop.f32.mrf.mxu0
        %v697 = vadd.f32 %v238, %v696
        %698 = vdwg.mxu0
        %v699 = vmax.f32 %v688, 0.0
        %v700 = vmax.f32 %v691, 0.0
        %v701 = vmax.f32 %v694, 0.0
        %v702 = vmax.f32 %v697, 0.0
        %v703 = vmul.f32 %v699, %v292
        %v704 = vmul.f32 %v700, %v292
        %v705 = vmul.f32 %v701, %v292
        %v706 = vmul.f32 %v702, %v292
        %v707 = vsel %vm298, %v703, 0.0
        %708 = vadd.xlane.f32.xlu0 %v707
        %v709 = vpop.xlane.xlu0 %708
        %v710 = vsel %vm298, %v704, 0.0
        %711 = vadd.xlane.f32.xlu0 %v710
        %v712 = vpop.xlane.xlu0 %711
        %v713 = vsel %vm298, %v705, 0.0
        %714 = vadd.xlane.f32.xlu0 %v713
        %v715 = vpop.xlane.xlu0 %714
        %v716 = vsel %vm298, %v706, 0.0
        %717 = vadd.xlane.f32.xlu0 %v716
        %v718 = vpop.xlane.xlu0 %717
        %vm719 = vcmp.eq.s32.totalorder %v224, 5
        %v720 = vsel %vm719, %v709, %v621
        %v721 = vsel %vm719, %v712, %v622
        %v722 = vsel %vm719, %v715, %v623
        %v723 = vsel %vm719, %v718, %v624
        %724 = vrot.lane.b32.xlu0 %v626, 84
        %v725 = vpop.permute.xlu0 %724
        %726 = vrot.lane.b32.xlu0 %v628, 84
        %v727 = vpop.permute.xlu0 %726
        %728 = vrot.lane.b32.xlu0 %v630, 84
        %v729 = vpop.permute.xlu0 %728
        %730 = vrot.lane.b32.xlu0 %v632, 84
        %v731 = vpop.permute.xlu0 %730
        %v732 = vsel %vm240, %v725, 0
        %v734 = vsel %vm240, %v727, 0
        %v736 = vsel %vm240, %v729, 0
        %v738 = vsel %vm240, %v731, 0
        %740 = vmatpush.msra.mxu0 0.0
        %741 = vmatpush.msra.mxu0 0.0
        %742 = vmatpush.msra.mxu0 0.0
        %743 = vmatpush.msra.mxu0 0.0
        %744 = vmatpush.msra.mxu0 0.0
        %745 = vmatpush.msra.mxu0 0.0
        %746 = vmatpush.msra.mxu0 0.0
        %747 = vmatpush.msra.mxu0 0.0
        %748 = vmatpush.msra.mxu0 0.0
        %749 = vmatpush.msra.mxu0 %v255
        %750 = vmatpush.msra.mxu0 %v234
        %751 = vmatpush.msra.mxu0 %v233
        %752 = vmatpush.msra.mxu0 %v232
        %753 = vmatpush.msra.mxu0 %v231
        %754 = vmatpush.msra.mxu0 %v230
        %755 = vmatpush.msra.mxu0 %v229
        %756 = vmatmul.f32.gmra.mxu0 %v732
        %v757 = vpop.f32.mrf.mxu0
        %v758 = vadd.f32 %v238, %v757
        %759 = vmatmul.f32.gmra.mxu0 %v734
        %v760 = vpop.f32.mrf.mxu0
        %v761 = vadd.f32 %v238, %v760
        %762 = vmatmul.f32.gmra.mxu0 %v736
        %v763 = vpop.f32.mrf.mxu0
        %v764 = vadd.f32 %v238, %v763
        %765 = vmatmul.f32.gmra.mxu0 %v738
        %v766 = vpop.f32.mrf.mxu0
        %v767 = vadd.f32 %v238, %v766
        %768 = vdwg.mxu0
        %v769 = vmax.f32 %v758, 0.0
        %v770 = vmax.f32 %v761, 0.0
        %v771 = vmax.f32 %v764, 0.0
        %v772 = vmax.f32 %v767, 0.0
        %v773 = vmul.f32 %v769, %v292
        %v774 = vmul.f32 %v770, %v292
        %v775 = vmul.f32 %v771, %v292
        %v776 = vmul.f32 %v772, %v292
        %v777 = vsel %vm298, %v773, 0.0
        %778 = vadd.xlane.f32.xlu0 %v777
        %v779 = vpop.xlane.xlu0 %778
        %v780 = vsel %vm298, %v774, 0.0
        %781 = vadd.xlane.f32.xlu0 %v780
        %v782 = vpop.xlane.xlu0 %781
        %v783 = vsel %vm298, %v775, 0.0
        %784 = vadd.xlane.f32.xlu0 %v783
        %v785 = vpop.xlane.xlu0 %784
        %v786 = vsel %vm298, %v776, 0.0
        %787 = vadd.xlane.f32.xlu0 %v786
        %v788 = vpop.xlane.xlu0 %787
        %vm789 = vcmp.eq.s32.totalorder %v224, 6
        %v790 = vsel %vm789, %v779, %v720
        %v791 = vsel %vm789, %v782, %v721
        %v792 = vsel %vm789, %v785, %v722
        %v793 = vsel %vm789, %v788, %v723
        %v794 = vld [vmem:[%s190 + $0x10] sm:$0xff]
        %v795 = vld [vmem:[%s190 + $0x18] sm:$0xff]
        %v796 = vld [vmem:[%s190 + $0x30] sm:$0xff]
        %v797 = vld [vmem:[%s190 + $0x38] sm:$0xff]
        %v798 = vld [vmem:[%s190 + $0x50] sm:$0xff]
        %v799 = vld [vmem:[%s190 + $0x58] sm:$0xff]
        %v800 = vld [vmem:[%s190 + $0x70] sm:$0xff]
        %v801 = vld [vmem:[%s190 + $0x78] sm:$0xff]
        %810 = vrot.lane.b32.xlu0 %v794, 34
        %v811 = vpop.permute.xlu0 %810
        %812 = vrot.lane.b32.xlu0 %v795, 34
        %v813 = vpop.permute.xlu0 %812
        %814 = vrot.lane.b32.xlu0 %v796, 34
        %v815 = vpop.permute.xlu0 %814
        %816 = vrot.lane.b32.xlu0 %v797, 34
        %v817 = vpop.permute.xlu0 %816
        %818 = vrot.lane.b32.xlu0 %v798, 34
        %v819 = vpop.permute.xlu0 %818
        %820 = vrot.lane.b32.xlu0 %v799, 34
        %v821 = vpop.permute.xlu0 %820
        %822 = vrot.lane.b32.xlu0 %v800, 34
        %v823 = vpop.permute.xlu0 %822
        %824 = vrot.lane.b32.xlu0 %v801, 34
        %v825 = vpop.permute.xlu0 %824
        %vm826 = vcmask 277504
        %v827 = vsel %vm826, %v811, %v813
        %v828 = vsel %vm826, %v815, %v817
        %v829 = vsel %vm826, %v819, %v821
        %v830 = vsel %vm826, %v823, %v825
        %v831 = vsel %vm240, %v827, 0
        %v833 = vsel %vm240, %v828, 0
        %v835 = vsel %vm240, %v829, 0
        %v837 = vsel %vm240, %v830, 0
        %839 = vmatpush.msra.mxu0 0.0
        %840 = vmatpush.msra.mxu0 0.0
        %841 = vmatpush.msra.mxu0 0.0
        %842 = vmatpush.msra.mxu0 0.0
        %843 = vmatpush.msra.mxu0 0.0
        %844 = vmatpush.msra.mxu0 0.0
        %845 = vmatpush.msra.mxu0 0.0
        %846 = vmatpush.msra.mxu0 0.0
        %847 = vmatpush.msra.mxu0 0.0
        %848 = vmatpush.msra.mxu0 %v255
        %849 = vmatpush.msra.mxu0 %v234
        %850 = vmatpush.msra.mxu0 %v233
        %851 = vmatpush.msra.mxu0 %v232
        %852 = vmatpush.msra.mxu0 %v231
        %853 = vmatpush.msra.mxu0 %v230
        %854 = vmatpush.msra.mxu0 %v229
        %855 = vmatmul.f32.gmra.mxu0 %v831
        %v856 = vpop.f32.mrf.mxu0
        %v857 = vadd.f32 %v238, %v856
        %858 = vmatmul.f32.gmra.mxu0 %v833
        %v859 = vpop.f32.mrf.mxu0
        %v860 = vadd.f32 %v238, %v859
        %861 = vmatmul.f32.gmra.mxu0 %v835
        %v862 = vpop.f32.mrf.mxu0
        %v863 = vadd.f32 %v238, %v862
        %864 = vmatmul.f32.gmra.mxu0 %v837
        %v865 = vpop.f32.mrf.mxu0
        %v866 = vadd.f32 %v238, %v865
        %867 = vdwg.mxu0
        %v868 = vmax.f32 %v857, 0.0
        %v869 = vmax.f32 %v860, 0.0
        %v870 = vmax.f32 %v863, 0.0
        %v871 = vmax.f32 %v866, 0.0
        %v872 = vmul.f32 %v868, %v292
        %v873 = vmul.f32 %v869, %v292
        %v874 = vmul.f32 %v870, %v292
        %v875 = vmul.f32 %v871, %v292
        %v876 = vsel %vm298, %v872, 0.0
        %877 = vadd.xlane.f32.xlu0 %v876
        %v878 = vpop.xlane.xlu0 %877
        %v879 = vsel %vm298, %v873, 0.0
        %880 = vadd.xlane.f32.xlu0 %v879
        %v881 = vpop.xlane.xlu0 %880
        %v882 = vsel %vm298, %v874, 0.0
        %883 = vadd.xlane.f32.xlu0 %v882
        %v884 = vpop.xlane.xlu0 %883
        %v885 = vsel %vm298, %v875, 0.0
        %886 = vadd.xlane.f32.xlu0 %v885
        %v887 = vpop.xlane.xlu0 %886
        %vm888 = vcmp.eq.s32.totalorder %v224, 7
        %v889 = vsel %vm888, %v878, %v790
        %v890 = vsel %vm888, %v881, %v791
        %v891 = vsel %vm888, %v884, %v792
        %v892 = vsel %vm888, %v887, %v793
        %vm893 = vcmask 64512
        %v894 = vsel %vm893, %v889, -inf
        %895 = vmax.xlane.f32.xlu0 %v894
        %v896 = vpop.xlane.xlu0 %895
        %v897 = vsel %vm893, %v890, -inf
        %898 = vmax.xlane.f32.xlu0 %v897
        %v899 = vpop.xlane.xlu0 %898
        %v900 = vsel %vm893, %v891, -inf
        %901 = vmax.xlane.f32.xlu0 %v900
        %v902 = vpop.xlane.xlu0 %901
        %v903 = vsel %vm893, %v892, -inf
        %904 = vmax.xlane.f32.xlu0 %v903
        %v905 = vpop.xlane.xlu0 %904
        %v906 = vsub.f32 %v889, %v896
        %v907 = vsub.f32 %v890, %v899
        %v908 = vsub.f32 %v891, %v902
        %v909 = vsub.f32 %v892, %v905
        %v910 = vmul.f32 %v906, 1.442695
        %v911 = vpow.pop %v910
        %v912 = vmul.f32 %v907, 1.442695
        %v913 = vpow.pop %v912
        %v914 = vmul.f32 %v908, 1.442695
        %v915 = vpow.pop %v914
        %v916 = vmul.f32 %v909, 1.442695
        %v917 = vpow.pop %v916
        %v918 = vsel %vm893, %v911, 0.0
        %919 = vadd.xlane.f32.xlu0 %v918
        %v920 = vpop.xlane.xlu0 %919
        %v921 = vsel %vm893, %v913, 0.0
        %922 = vadd.xlane.f32.xlu0 %v921
        %v923 = vpop.xlane.xlu0 %922
        %v924 = vsel %vm893, %v915, 0.0
        %925 = vadd.xlane.f32.xlu0 %v924
        %v926 = vpop.xlane.xlu0 %925
        %v927 = vsel %vm893, %v917, 0.0
        %928 = vadd.xlane.f32.xlu0 %v927
        %v929 = vpop.xlane.xlu0 %928
        %v930 = vrcp.pop %v920
        %v931 = vmul.f32 %v920, %v930
        %v932 = vsub.f32 1.0, %v931
        %v933 = vmul.f32 %v930, %v932
        %v934 = vadd.f32 %v930, %v933
        %vm935 = vweird.f32 %v920
        %vm936 = vweird.f32 %v930
        %vm937 = vmor %vm935, %vm936
        %v938 = vsel %vm937, %v930, %v934
        %v939 = vand.u32 2147483647, %v920
        %vm940 = vcmp.eq.f32.partialorder %v939, 8.507059e+37
        %v941 = vand.u32 %v920, 2147483648
        %v942 = vor.u32 1.1754944e-38, %v941
        %v943 = vsel %vm940, %v942, %v938
        %v944 = vrcp.pop %v923
        %v945 = vmul.f32 %v923, %v944
        %v946 = vsub.f32 1.0, %v945
        %v947 = vmul.f32 %v944, %v946
        %v948 = vadd.f32 %v944, %v947
        %vm949 = vweird.f32 %v923
        %vm950 = vweird.f32 %v944
        %vm951 = vmor %vm949, %vm950
        %v952 = vsel %vm951, %v944, %v948
        %v953 = vand.u32 2147483647, %v923
        %vm954 = vcmp.eq.f32.partialorder %v953, 8.507059e+37
        %v955 = vand.u32 %v923, 2147483648
        %v956 = vor.u32 1.1754944e-38, %v955
        %v957 = vsel %vm954, %v956, %v952
        %v958 = vrcp.pop %v926
        %v959 = vmul.f32 %v926, %v958
        %v960 = vsub.f32 1.0, %v959
        %v961 = vmul.f32 %v958, %v960
        %v962 = vadd.f32 %v958, %v961
        %vm963 = vweird.f32 %v926
        %vm964 = vweird.f32 %v958
        %vm965 = vmor %vm963, %vm964
        %v966 = vsel %vm965, %v958, %v962
        %v967 = vand.u32 2147483647, %v926
        %vm968 = vcmp.eq.f32.partialorder %v967, 8.507059e+37
        %v969 = vand.u32 %v926, 2147483648
        %v970 = vor.u32 1.1754944e-38, %v969
        %v971 = vsel %vm968, %v970, %v966
        %v972 = vrcp.pop %v929
        %v973 = vmul.f32 %v929, %v972
        %v974 = vsub.f32 1.0, %v973
        %v975 = vmul.f32 %v972, %v974
        %v976 = vadd.f32 %v972, %v975
        %vm977 = vweird.f32 %v929
        %vm978 = vweird.f32 %v972
        %vm979 = vmor %vm977, %vm978
        %v980 = vsel %vm979, %v972, %v976
        %v981 = vand.u32 2147483647, %v929
        %vm982 = vcmp.eq.f32.partialorder %v981, 8.507059e+37
        %v983 = vand.u32 %v929, 2147483648
        %v984 = vor.u32 1.1754944e-38, %v983
        %v985 = vsel %vm982, %v984, %v980
        %v986 = vmul.f32 %v911, %v943
        %v987 = vmul.f32 %v913, %v957
        %v988 = vmul.f32 %v915, %v971
        %v989 = vmul.f32 %v917, %v985
        %990 = vst.msk [vmem:[%s221] sm:$0xff] %vm893, %v986
        %991 = vst.msk [vmem:[%s221 + $0x8] sm:$0xff] %vm893, %v987
        %992 = vst.msk [vmem:[%s221 + $0x10] sm:$0xff] %vm893, %v988
        %993 = vst.msk [vmem:[%s221 + $0x18] sm:$0xff] %vm893, %v989
        %s994 = smul.u32 4, %s18
        %p995 = scmp.lt.s32.totalorder %s994, 7
        %s996 = scalar_select %p995, %s994, 7
        %s997 = smul.addr %s996, 8
        %s998 = scalar_lea.vmem %s4, %s997
        // Predicated region
        $region41: #{tpu_custom_call.1} parent=35 // pred_check
          %p999 = pneg %p125
        $region42: #{tpu_custom_call.1} parent=35 // pred_check_branch
          %1001 = sbr.rel (%p999) target = $region44
        $region43: #{tpu_custom_call.1} parent=35 // pred_region
          %s1002 = smul.u32 4, %s18
        $region44: #{tpu_custom_call.1} parent=35 // pred_fallthru
          _
      $region36: #{tpu_custom_call.1} parent=5 // pred_fallthru
        _
      %p1003 = scmp.le.s32.totalorder 2, %s13
      // Predicated region
      $region45: #{tpu_custom_call.1} parent=5 // pred_check
        %p1004 = pneg %p1003
      $region46: #{tpu_custom_call.1} parent=5 // pred_check_branch
        %1006 = sbr.rel (%p1004) target = $region48
      $region47: #{tpu_custom_call.1} parent=5 // pred_region
        %s1007 = ssub.s32 %s13, 2
        // Predicated region
        $region49: #{tpu_custom_call.1} parent=47 // pred_check
          %p1008 = pneg %p131
        $region50: #{tpu_custom_call.1} parent=47 // pred_check_branch
          %1010 = sbr.rel (%p1008) target = $region52
        $region51: #{tpu_custom_call.1} parent=47 // pred_region
          %s1011 = smul.u32 4, %s19
          %p1012 = scmp.lt.s32.totalorder %s1011, 7
          %s1013 = scalar_select %p1012, %s1011, 7
          %s1014 = smul.addr %s1013, 8
          %s1015 = scalar_lea.vmem %s4, %s1014
        $region52: #{tpu_custom_call.1} parent=47 // pred_fallthru
          _
      $region48: #{tpu_custom_call.1} parent=5 // pred_fallthru
        _
    $region6: #{tpu_custom_call.1} parent=1 // loop_footer
      %s17 = sadd.s32 1, %s13
    $region7: #{tpu_custom_call.1} parent=1 // loop_footer_branch
      %12 = sbr.rel target = $region3
    $region8: #{tpu_custom_call.1} parent=1 // loop_exit
      _
    %1016 = vsyncpa [#allocation3], 1
    %s1017 = scalar_lea.sflag [#allocation3], 1
    %1018 = vsyncpa %s1017, 1

</llo_original>
